<compile_context>
chip_gen: v6e
topology: v6e:2x2x1
jax: 0.10.0
libtpu: 0.0.40
codegen_flags: <defaults>
</compile_context>

<pallas_src>
import math

import jax
import jax.numpy as jnp
from jax.experimental import pallas as pl
from jax.experimental.pallas import tpu as pltpu


def _cdiv(a, b):
    return -(-a // b)


def _round_up(v, m):
    return ((v + m - 1) // m) * m


def _add_task_row_kernel(x_ref, te_ref, o_ref):
    # x_ref : (row_tile, col_tile) tile of lane-packed activations
    # te_ref: (1, col_tile) lane-packed task-encoding slice, broadcast over rows
    o_ref[...] = x_ref[...] + te_ref[...]


def build_task_encoding_table(hdim, max_tasks=20, dtype=jnp.float32):
    """Deterministic sinusoidal task-encoding table, identical to the torch init."""
    position = jnp.arange(0, max_tasks, dtype=jnp.float32)[:, None]            # (T, 1)
    div_term = jnp.exp(
        jnp.arange(0, hdim, 2, dtype=jnp.float32) * (-math.log(10000.0) / hdim)
    )                                                                           # (ceil(H/2),)
    angles = position * div_term                                                # (T, ceil(H/2))
    te = jnp.zeros((max_tasks, hdim), dtype=jnp.float32)
    te = te.at[:, 0::2].set(jnp.sin(angles))
    te = te.at[:, 1::2].set(jnp.cos(angles)[:, : hdim // 2])                    # odd-H safe
    return te.astype(dtype)


def _lane_pack_factor(hdim):
    """Smallest k such that (k * hdim) % 128 == 0 (lane-dense packed width)."""
    return 128 // math.gcd(hdim, 128)


def _sublane_multiple(dtype):
    """Native sublane packing: 8 (32-bit), 16 (16-bit), 32 (8-bit)."""
    return {4: 8, 2: 16, 1: 32}.get(jnp.dtype(dtype).itemsize, 8)


def _vmem_capacity_bytes():
    """Physical VMEM per core; conservative 64 MiB (v7x) fallback if unknown."""
    try:
        info = pltpu.get_tpu_info()
        cap = getattr(info, "vmem_capacity_bytes", None)
        if cap:
            return int(cap)
    except Exception:
        pass
    return 64 * 1024 * 1024


def _pick_tiles(rows_p, width, itemsize, sublane, target_bytes):
    """Pick (row_tile, col_tile): ~target_bytes per block, sublane-aligned rows,
    lane-dense (multiple-of-128) columns, even row-step count when grid > 1."""
    row_bytes = width * itemsize
    if rows_p <= sublane:
        row_tile = rows_p                          # full-dim block (always legal)
    else:
        row_tile = max(sublane, (target_bytes // row_bytes) // sublane * sublane)
        row_tile = min(row_tile, _round_up(rows_p, sublane))
        if row_tile < rows_p:
            nsteps = _cdiv(rows_p, row_tile)
            if nsteps % 2 == 1:
                # even step count -> both v7x TensorCores get equal work
                cand = _round_up(_cdiv(rows_p, nsteps + 1), sublane)
                if cand >= sublane and _cdiv(rows_p, cand) % 2 == 0:
                    row_tile = cand
    col_tile = width
    if row_tile * col_tile * itemsize > target_bytes and width > 128:
        # few, very wide rows: split along the lane axis (multiples of 128)
        # instead of one huge block that could exceed the VMEM budget
        col_tile = max(128, (target_bytes // (row_tile * itemsize)) // 128 * 128)
        col_tile = min(col_tile, width)
    return row_tile, col_tile


def task_encoding_forward(x, te, task_id):
    """x: (B, S, H); te: (max_tasks, H); task_id: int / int32 scalar.

    Eval-mode forward: out = x + te[task_id] (dropout == identity).
    """
    B, S, H = x.shape
    rows = B * S

    # Select the task row in the wrapper (constant over the whole grid) and
    # cast to the activation dtype so the in-kernel add is a single VPU op.
    tid = jnp.asarray(task_id, jnp.int32)
    te_row = jax.lax.dynamic_slice_in_dim(te, tid, 1, axis=0).astype(x.dtype)   # (1, H)

    # Lane-dense packing: fold k consecutive rows into one (k*H)-wide row so
    # stores are full-width. Pad rows to a multiple of k (no k=1 fallback).
    k = _lane_pack_factor(H)
    W = k * H                                                                   # multiple of 128
    rows_pad = _round_up(rows, k)
    x_flat = x.reshape(rows, H)
    if rows_pad != rows:
        x_flat = jnp.pad(x_flat, ((0, rows_pad - rows), (0, 0)))
    rows_p = rows_pad // k
    x2 = x_flat.reshape(rows_p, W)
    te_row_p = jnp.tile(te_row, (1, k))                                         # (1, W)

    itemsize = jnp.dtype(x.dtype).itemsize
    sublane = _sublane_multiple(x.dtype)
    vmem_phys = _vmem_capacity_bytes()
    target_bytes = max(2 * 1024 * 1024, vmem_phys // 8)   # ~8 MiB v7x, ~16 MiB v5e/v6e
    row_tile, col_tile = _pick_tiles(rows_p, W, itemsize, sublane, target_bytes)

    grid = (_cdiv(rows_p, row_tile), _cdiv(W, col_tile))

    block_bytes = row_tile * col_tile * itemsize
    vmem_needed = 4 * block_bytes + 4 * col_tile * itemsize + (2 << 20)
    vmem_limit = min(int(0.8 * vmem_phys), max(32 << 20, vmem_needed))

    out2 = pl.pallas_call(
        _add_task_row_kernel,
        out_shape=jax.ShapeDtypeStruct((rows_p, W), x.dtype),
        grid=grid,
        in_specs=[
            # activations: large sublane-aligned row tiles, lane-dense columns
            pl.BlockSpec((row_tile, col_tile), lambda i, j: (i, j)),
            # task-encoding row: same (1, col_tile) block for every row step
            pl.BlockSpec((1, col_tile), lambda i, j: (0, j)),
        ],
        out_specs=pl.BlockSpec((row_tile, col_tile), lambda i, j: (i, j)),
        compiler_params=pltpu.CompilerParams(
            dimension_semantics=("parallel", "parallel"),
            vmem_limit_bytes=vmem_limit,
        ),
    )(x2, te_row_p)

    return out2.reshape(rows_pad, H)[:rows].reshape(B, S, H)


if __name__ == "__main__":
    MAX_TASKS = 20
    key = jax.random.PRNGKey(0)

    # Case 1: even rows, f32 (no padding needed).
    B, S, H = 2, 8, 32
    task_id = 3
    k1, k2 = jax.random.split(key)
    x = jax.random.normal(k1, (B, S, H), dtype=jnp.float32)
    te = build_task_encoding_table(H, MAX_TASKS)
    ref = x + te[task_id][None, None, :]
    out = jax.block_until_ready(task_encoding_forward(x, te, task_id))
    assert out.shape == x.shape
    assert jnp.allclose(out, ref, atol=1e-6, rtol=1e-6), "mismatch (case 1)"

    # Case 2: odd row count (exercises lane-pack padding) + bf16 activations.
    B2, S2, H2 = 3, 5, 48
    task_id2 = 7
    x_b = jax.random.normal(k2, (B2, S2, H2), dtype=jnp.float32).astype(jnp.bfloat16)
    te2 = build_task_encoding_table(H2, MAX_TASKS)
    ref_b = x_b + te2[task_id2].astype(jnp.bfloat16)[None, None, :]
    out_b = jax.block_until_ready(task_encoding_forward(x_b, te2, task_id2))
    assert out_b.shape == x_b.shape
    assert jnp.allclose(
        out_b.astype(jnp.float32), ref_b.astype(jnp.float32), atol=1e-2, rtol=1e-2
    ), "mismatch (case 2)"

    print("KERNEL_OK")
</pallas_src>

<mosaic_0001>
module attributes {stable_mosaic.version = 11 : i64} {
  func.func @_add_task_row_kernel(%arg0: i32, %arg1: i32, %arg2: memref<4x128xf32, #tpu.memory_space<vmem>>, %arg3: memref<1x128xf32, #tpu.memory_space<vmem>>, %arg4: memref<4x128xf32, #tpu.memory_space<vmem>>) attributes {dimension_semantics = [#tpu.dimension_semantics<parallel>, #tpu.dimension_semantics<parallel>], iteration_bounds = array<i64: 1, 1>, scalar_prefetch = 0 : i64, scratch_operands = 0 : i64, tpu.core_type = #tpu.core_type<tc>, window_params = [{transform_indices = @transform_0, window_bounds = array<i64: 4, 128>}, {transform_indices = @transform_1, window_bounds = array<i64: 1, 128>}, {transform_indices = @transform_2, window_bounds = array<i64: 4, 128>}]} {
    %c0 = arith.constant 0 : index
    %c0_0 = arith.constant 0 : index
    %0 = vector.load %arg2[%c0, %c0_0] : memref<4x128xf32, #tpu.memory_space<vmem>>, vector<4x128xf32>
    %c0_1 = arith.constant 0 : index
    %c0_2 = arith.constant 0 : index
    %1 = vector.load %arg3[%c0_1, %c0_2] : memref<1x128xf32, #tpu.memory_space<vmem>>, vector<1x128xf32>
    %2 = vector.broadcast %1 : vector<1x128xf32> to vector<4x128xf32>
    %3 = arith.addf %0, %2 : vector<4x128xf32>
    %c0_3 = arith.constant 0 : index
    %c0_4 = arith.constant 0 : index
    %4 = vector.load %arg4[%c0_3, %c0_4] : memref<4x128xf32, #tpu.memory_space<vmem>>, vector<4x128xf32>
    tpu.vector_store %arg4[%c0_3, %c0_4], %3 {strides = array<i32>} : memref<4x128xf32, #tpu.memory_space<vmem>>, vector<4x128xf32>,
    return
  }
  func.func @transform_0(%arg0: i32, %arg1: i32) -> (i32, i32) {
    %c0_i32 = arith.constant 0 : i32
    return %arg0, %arg1 : i32, i32
  }
  func.func @transform_1(%arg0: i32, %arg1: i32) -> (i32, i32) {
    %c0_i32 = arith.constant 0 : i32
    %c0_i32_0 = arith.constant 0 : i32
    return %c0_i32, %arg1 : i32, i32
  }
  func.func @transform_2(%arg0: i32, %arg1: i32) -> (i32, i32) {
    %c0_i32 = arith.constant 0 : i32
    return %arg0, %arg1 : i32, i32
  }
}

</mosaic_0001>

<llo_original>
// kernel: tpu_custom_call.1
$region0: #{tpu_custom_call.1}
  #allocation0 [shape = 'u32[]', space=smem, size = 0x4, offset = 0x4, fixed_abs, tag = 'smem constant byte address 0x4 - core index']
  #allocation1 [shape = 'u32[144,128]{1,0:T(1,128)}', space=vmem, size = 0x12000, scoped, tag = 'internal scratch']
  %s0 = inlined_call_operand.hbm [shape: f32[4,128], index: 0, kind: input, shape index: {}]
  %s1 = inlined_call_operand.vmem [shape: f32[1,128], index: 1, kind: input, shape index: {}]
  %s2 = inlined_call_operand.hbm [shape: f32[4,128], index: 2, kind: output, shape index: {}]
  %s3 = sld [smem:[#allocation0]]
  $region22: #{tpu_custom_call.1} parent=0
    _
  %s5 = ssub.s32 1, %s3
  %s6 = scalar_select 0, %s5, %s3
  $region1: #{tpu_custom_call.1} parent=0
    #allocation2 [shape = 'u8[2048]{0}', space=vmem, size = 0x800, scoped, tag = 'input window, operand 0, single buffered']
    #allocation3 [shape = 's32[1]{0}', space=sflag, size = 0x4, scoped, tag = 'scoped memory for tpu_custom_call.1']
    #allocation4 [shape = 's32[1]{0}', space=sflag, size = 0x4, scoped, tag = 'scoped memory for tpu_custom_call.1']
    #allocation5 [shape = 'u8[2048]{0}', space=vmem, size = 0x800, scoped, tag = 'output window, operand 0, single buffered']
    %7 = vsyncpa [#allocation3], 0
    %8 = vsyncpa [#allocation4], 0
    // Predicated region
    $region2: #{tpu_custom_call.1} parent=1 // pred_check
      _
    $region3: #{tpu_custom_call.1} parent=1 // pred_check_branch
      %10 = sbr.rel (0) target = $region5
    $region4: #{tpu_custom_call.1} parent=1 // pred_region
      %s12 = ssub.s32 64, 64
      %13 = vsyncadd [#allocation3], %s12
      %s15 = sshll.u32 [#allocation2], 4
      %s16 = int_to_ptr.vmem [resolvable:$true] %s15
      %18 = dma.hbm_to_vmem [thread:$0]  %s0, 64, %s16, [#allocation3]
    $region5: #{tpu_custom_call.1} parent=1 // pred_fallthru
      _
    // Predicated region
    $region6: #{tpu_custom_call.1} parent=1 // pred_check
      _
    $region7: #{tpu_custom_call.1} parent=1 // pred_check_branch
      %20 = sbr.rel (0) target = $region9
    $region8: #{tpu_custom_call.1} parent=1 // pred_region
      _
    $region9: #{tpu_custom_call.1} parent=1 // pred_fallthru
      _
    // Predicated region
    $region10: #{tpu_custom_call.1} parent=1 // pred_check
      _
    $region11: #{tpu_custom_call.1} parent=1 // pred_check_branch
      %22 = sbr.rel (0) target = $region13
    $region12: #{tpu_custom_call.1} parent=1 // pred_region
      %23 = dma.done [#allocation3], 64
    $region13: #{tpu_custom_call.1} parent=1 // pred_fallthru
      _
    %v24 = vld [vmem:[#allocation2] sm:$0xf]
    %v25 = vld [vmem:[%s1] sm:$0x1]
    %v27 = vlaneseq
    %v28 = vshrl.u32 %v27, 7
    %v29 = vsub.s32 0, %v28
    %v30 = vrot.slane %v25, %v29
    %v32 = vadd.f32 %v24, %v30
    %33 = vst [vmem:[#allocation5] sm:$0xf] %v32
    // Predicated region
    $region14: #{tpu_custom_call.1} parent=1 // pred_check
      _
    $region15: #{tpu_custom_call.1} parent=1 // pred_check_branch
      %35 = sbr.rel (0) target = $region17
    $region16: #{tpu_custom_call.1} parent=1 // pred_region
      %s37 = ssub.s32 64, 64
      %38 = vsyncadd [#allocation4], %s37
      %s40 = sshll.u32 [#allocation5], 4
      %s41 = int_to_ptr.vmem [resolvable:$true] %s40
      %43 = dma.vmem_to_hbm [thread:$0]  %s41, 64, %s2, [#allocation4]
    $region17: #{tpu_custom_call.1} parent=1 // pred_fallthru
      _
    // Predicated region
    $region18: #{tpu_custom_call.1} parent=1 // pred_check
      _
    $region19: #{tpu_custom_call.1} parent=1 // pred_check_branch
      %45 = sbr.rel (0) target = $region21
    $region20: #{tpu_custom_call.1} parent=1 // pred_region
      %46 = dma.done [#allocation4], 64
    $region21: #{tpu_custom_call.1} parent=1 // pred_fallthru
      _
    %47 = vsyncpa [#allocation3], 1
    %48 = vsyncpa [#allocation4], 1

</llo_original>
